<compile_context>
chip_gen: v7x
topology: tpu7x:2x2x1
jax: 0.10.0
libtpu: 0.0.40
codegen_flags: <defaults>
</compile_context>

<pallas_src>
import jax
import jax.numpy as jnp
from jax import lax
from jax.experimental import pallas as pl
from jax.experimental.pallas import tpu as pltpu

LANE = 128            # vreg lane width
SUBLANE = 8           # f32 sublanes per vreg (accumulator shape)
CHUNK_ROWS = 512      # rows processed per inner-loop step (256 KiB f32 per array)
BLOCK_ROWS = 8192     # rows per grid step: 4 MiB f32 per input block
VMEM_LIMIT = 48 * 1024 * 1024


def _round_up(a: int, b: int) -> int:
    return ((a + b - 1) // b) * b


def _make_charbonnier_partial_kernel(eps2: float, block_rows: int, chunk_rows: int,
                                     num_chunks: int, valid_rows: int,
                                     needs_mask: bool):
    # NOTE: every closed-over value here is a Python scalar -> jaxpr literal,
    # never a captured jax.Array constant.
    eps2 = float(eps2)

    def kernel(x_ref, y_ref, out_ref):
        base = pl.program_id(0) * block_rows

        def body(c, acc):
            r = pl.multiple_of(c * chunk_rows, chunk_rows)
            # Cast in-kernel (VPU) so narrow inputs stay narrow in HBM.
            xc = x_ref[pl.ds(r, chunk_rows), :].astype(jnp.float32)
            yc = y_ref[pl.ds(r, chunk_rows), :].astype(jnp.float32)
            d = xc - yc
            v = jnp.sqrt(d * d + eps2)
            if needs_mask:
                # Out-of-bounds rows of the (partial) last block contain
                # unspecified data; zero their contribution.
                rows = base + r + lax.broadcasted_iota(
                    jnp.int32, (chunk_rows, LANE), 0)
                v = jnp.where(rows < valid_rows, v, 0.0)
            # (chunk, 128) -> (chunk//8, 8, 128): leading-axis sum keeps the
            # running partial vreg-shaped (pure VPU adds, no XLU cross-lane work).
            return acc + jnp.sum(v.reshape(-1, SUBLANE, LANE), axis=0)

        acc0 = jnp.zeros((SUBLANE, LANE), jnp.float32)
        out_ref[...] = lax.fori_loop(0, num_chunks, body, acc0, unroll=True)

    return kernel


def charbonnier_loss(x, y, eps: float = 1e-3, block_rows: int = BLOCK_ROWS):
    """Pallas TPU implementation of CharbonnierLoss.forward(x, y)."""
    assert x.shape == y.shape
    n = x.size
    eps = float(eps)
    eps2 = eps * eps

    xf = x.reshape(-1)
    yf = y.reshape(-1)

    # Row alignment: 8 for 4-byte dtypes, 16 for bf16, 32 for 1-byte dtypes
    # (keeps the BlockSpec compatible with the packed sublane tiling).
    itemsize = jnp.dtype(x.dtype).itemsize
    align = SUBLANE * max(1, 4 // max(1, itemsize))

    rows_full = n // LANE          # complete 128-lane rows
    total = jnp.float32(0.0)
    covered = 0

    if rows_full >= 2 * align:
        # --- choose grid / block / chunk sizes (all static Python ints) ---
        nb = pl.cdiv(rows_full, block_rows)
        if nb < 2:
            nb = 2                                    # keep both v7x TCs busy
        br = _round_up(pl.cdiv(rows_full, nb), align)
        if br > CHUNK_ROWS:
            br = _round_up(br, CHUNK_ROWS)
            chunk = CHUNK_ROWS
        else:
            chunk = br
        nb = pl.cdiv(rows_full, br)
        num_chunks = br // chunk
        needs_mask = (nb * br != rows_full)           # partial last block?

        covered = rows_full * LANE
        x2 = xf[:covered].reshape(rows_full, LANE)
        y2 = yf[:covered].reshape(rows_full, LANE)

        partials = pl.pallas_call(
            _make_charbonnier_partial_kernel(eps2, br, chunk, num_chunks,
                                             rows_full, needs_mask),
            out_shape=jax.ShapeDtypeStruct((nb * SUBLANE, LANE), jnp.float32),
            grid_spec=pltpu.PrefetchScalarGridSpec(
                num_scalar_prefetch=0,
                grid=(nb,),
                in_specs=[
                    pl.BlockSpec((br, LANE), lambda i: (i, 0)),
                    pl.BlockSpec((br, LANE), lambda i: (i, 0)),
                ],
                out_specs=pl.BlockSpec((SUBLANE, LANE), lambda i: (i, 0)),
            ),
            compiler_params=pltpu.CompilerParams(
                dimension_semantics=("parallel",),
                vmem_limit_bytes=VMEM_LIMIT,
            ),
        )(x2, y2)
        total = total + jnp.sum(partials)

    # Only the final sub-128-element fragment (or tiny inputs) falls back to
    # plain JAX — bounded and independent of block size.
    if covered < n:
        xt = xf[covered:].astype(jnp.float32)
        yt = yf[covered:].astype(jnp.float32)
        dt = xt - yt
        total = total + jnp.sum(jnp.sqrt(dt * dt + jnp.float32(eps2)))

    return total / n


if __name__ == "__main__":
    key = jax.random.PRNGKey(0)
    kx, ky = jax.random.split(key)
    # Small NCHW inputs consistent with a typical image-restoration use case.
    x = jax.random.normal(kx, (2, 4, 16, 16), dtype=jnp.float32)
    y = jax.random.normal(ky, (2, 4, 16, 16), dtype=jnp.float32)

    loss = charbonnier_loss(x, y, eps=1e-3)
    jax.block_until_ready(loss)

    # Reference check in plain JAX (same semantics as the PyTorch module).
    diff = x - y
    ref = jnp.mean(jnp.sqrt(diff * diff + jnp.float32(1e-3 * 1e-3)))
    assert jnp.allclose(loss, ref, rtol=1e-5, atol=1e-6), (loss, ref)

    print("KERNEL_OK")
</pallas_src>

<mosaic_0001>
module attributes {stable_mosaic.version = 11 : i64} {
  func.func @kernel(%arg0: i32, %arg1: memref<8x128xf32, #tpu.memory_space<vmem>>, %arg2: memref<8x128xf32, #tpu.memory_space<vmem>>, %arg3: memref<8x128xf32, #tpu.memory_space<vmem>>) attributes {dimension_semantics = [#tpu.dimension_semantics<parallel>], iteration_bounds = array<i64: 2>, scalar_prefetch = 0 : i64, scratch_operands = 0 : i64, tpu.core_type = #tpu.core_type<tc>, window_params = [{transform_indices = @transform_0, window_bounds = array<i64: 8, 128>}, {transform_indices = @transform_1, window_bounds = array<i64: 8, 128>}, {transform_indices = @transform_2, window_bounds = array<i64: 8, 128>}]} {
    %cst = arith.constant 0.000000e+00 : f32
    %0 = vector.broadcast %cst : f32 to vector<8x128xf32>
    %c0_i32 = arith.constant 0 : i32
    %c8_i32 = arith.constant 8 : i32
    %1 = arith.muli %c0_i32, %c8_i32 : i32
    %2 = tpu.assume_multiple %1, 8 : i32
    %3 = arith.index_cast %2 : i32 to index
    %c0 = arith.constant 0 : index
    %4 = vector.load %arg1[%3, %c0] : memref<8x128xf32, #tpu.memory_space<vmem>>, vector<8x128xf32>
    %5 = arith.index_cast %2 : i32 to index
    %c0_0 = arith.constant 0 : index
    %6 = vector.load %arg2[%5, %c0_0] : memref<8x128xf32, #tpu.memory_space<vmem>>, vector<8x128xf32>
    %7 = arith.subf %4, %6 : vector<8x128xf32>
    %8 = arith.mulf %7, %7 : vector<8x128xf32>
    %cst_1 = arith.constant 9.99999997E-7 : f32
    %9 = vector.broadcast %cst_1 : f32 to vector<8x128xf32>
    %10 = arith.addf %8, %9 : vector<8x128xf32>
    %11 = math.sqrt %10 : vector<8x128xf32>
    %12 = vector.shape_cast %11 : vector<8x128xf32> to vector<1x8x128xf32>
    %cst_2 = arith.constant dense<0.000000e+00> : vector<8x128xf32>
    %13 = vector.multi_reduction <add>, %12, %cst_2 [0] : vector<1x8x128xf32> to vector<8x128xf32>
    %14 = arith.addf %0, %13 : vector<8x128xf32>
    %c1_i32 = arith.constant 1 : i32
    %c0_3 = arith.constant 0 : index
    %c0_4 = arith.constant 0 : index
    %15 = vector.load %arg3[%c0_3, %c0_4] : memref<8x128xf32, #tpu.memory_space<vmem>>, vector<8x128xf32>
    tpu.vector_store %arg3[%c0_3, %c0_4], %14 {strides = array<i32>} : memref<8x128xf32, #tpu.memory_space<vmem>>, vector<8x128xf32>,
    return
  }
  func.func @transform_0(%arg0: i32) -> (i32, i32) {
    %c0_i32 = arith.constant 0 : i32
    %c0_i32_0 = arith.constant 0 : i32
    return %arg0, %c0_i32 : i32, i32
  }
  func.func @transform_1(%arg0: i32) -> (i32, i32) {
    %c0_i32 = arith.constant 0 : i32
    %c0_i32_0 = arith.constant 0 : i32
    return %arg0, %c0_i32 : i32, i32
  }
  func.func @transform_2(%arg0: i32) -> (i32, i32) {
    %c0_i32 = arith.constant 0 : i32
    %c0_i32_0 = arith.constant 0 : i32
    return %arg0, %c0_i32 : i32, i32
  }
}

</mosaic_0001>

<llo_original>
// kernel: tpu_custom_call.1
$region0: #{tpu_custom_call.1}
  #allocation0 [shape = 'u32[]', space=smem, size = 0x4, offset = 0x4, fixed_abs, tag = 'smem constant byte address 0x4 - core index']
  #allocation1 [shape = 'u32[144,128]{1,0:T(1,128)}', space=vmem, size = 0x12000, scoped, tag = 'internal scratch']
  %s0 = inlined_call_operand.hbm [shape: f32[16,128], index: 0, kind: input, shape index: {}]
  %s1 = inlined_call_operand.hbm [shape: f32[16,128], index: 1, kind: input, shape index: {}]
  %s2 = inlined_call_operand.hbm [shape: f32[16,128], index: 2, kind: output, shape index: {}]
  %s3 = sld [smem:[#allocation0]]
  $region49: #{tpu_custom_call.1} parent=0
    _
  %s5 = ssub.s32 1, %s3
  %s6 = scalar_select 0, %s5, %s3
  $region1: #{tpu_custom_call.1} parent=0
    #allocation2 [shape = 'u8[8192]{0}', space=vmem, size = 0x2000, scoped, tag = 'input window, operand 0']
    #allocation3 [shape = 's32[2]{0}', space=sflag, size = 0x8, scoped, tag = 'scoped memory for tpu_custom_call.1']
    #allocation4 [shape = 's32[2]{0}', space=sflag, size = 0x8, scoped, tag = 'scoped memory for tpu_custom_call.1']
    #allocation5 [shape = 'u8[8192]{0}', space=vmem, size = 0x2000, scoped, tag = 'input window, operand 1']
    #allocation6 [shape = 's32[2]{0}', space=sflag, size = 0x8, scoped, tag = 'scoped memory for tpu_custom_call.1']
    #allocation7 [shape = 'u8[8192]{0}', space=vmem, size = 0x2000, scoped, tag = 'output window, operand 0']
    %7 = vsyncpa [#allocation3], 0
    %s8 = scalar_lea.sflag [#allocation3], 1
    %9 = vsyncpa %s8, 0
    %10 = vsyncpa [#allocation6], 0
    %s11 = scalar_lea.sflag [#allocation6], 1
    %12 = vsyncpa %s11, 0
    %13 = vsyncpa [#allocation4], 0
    %s14 = scalar_lea.sflag [#allocation4], 1
    %15 = vsyncpa %s14, 0
    loop: start=0, step=1, limit=4
    $region2: #{tpu_custom_call.1} parent=1 // loop_pre_header
      _
    $region3: #{tpu_custom_call.1} parent=1 // loop_header
      %s17 = sphi 0, %s21
      %p18 = scmp.ge.s32.totalorder %s17, 4
      %s27 = sphi 0, %s29
      %s30 = sphi 0, %s27
      %s31 = sphi 0, %s30
      %s47 = sphi 0, %s31
      %s53 = sphi 0, %s55
      %s56 = sphi 0, %s53
      %s57 = sphi 0, %s56
      %s73 = sphi 0, %s57
      %s79 = sphi 0, %s81
      %s82 = sphi 0, %s79
      %s83 = sphi 0, %s82
      %s99 = sphi 0, %s83
    $region4: #{tpu_custom_call.1} parent=1 // loop_header_branch
      %20 = sbr.rel (%p18) target = $region8
    $region5: #{tpu_custom_call.1} parent=1 // loop_body
      %s22 = ssub.s32 %s17, 1
      %s23 = ssub.s32 %s17, 2
      %s24 = sadd.s32 %s17, 1
      %s25 = ssub.s32 %s17, %s24
      %p26 = scmp.eq.s32.totalorder %s25, 0
      %s28 = sadd.s32 %s27, 1
      %s29 = scalar_select %p26, %s27, %s28
      %p32 = pneg %p26
      %p33 = scmp.eq.s32.totalorder %s17, 1
      %p34 = por %p32, %p33
      %p35 = scmp.ne.s32.totalorder %s27, %s30
      %p36 = scmp.eq.s32.totalorder %s17, 0
      %p37 = por %p35, %p36
      %p38 = scmp.ne.s32.totalorder %s27, %s30
      %p39 = scmp.eq.s32.totalorder %s22, 1
      %p40 = por %p38, %p39
      %p41 = scmp.ne.s32.totalorder %s30, %s31
      %p42 = scmp.eq.s32.totalorder %s22, 0
      %p43 = por %p41, %p42
      %p44 = scmp.ne.s32.totalorder %s30, %s31
      %p45 = scmp.eq.s32.totalorder %s23, 1
      %p46 = por %p44, %p45
      %p48 = scmp.ne.s32.totalorder %s31, %s47
      %p49 = scmp.eq.s32.totalorder %s23, 0
      %p50 = por %p48, %p49
      %s51 = ssub.s32 %s17, %s24
      %p52 = scmp.eq.s32.totalorder %s51, 0
      %s54 = sadd.s32 %s53, 1
      %s55 = scalar_select %p52, %s53, %s54
      %p58 = pneg %p52
      %p59 = scmp.eq.s32.totalorder %s17, 1
      %p60 = por %p58, %p59
      %p61 = scmp.ne.s32.totalorder %s53, %s56
      %p62 = scmp.eq.s32.totalorder %s17, 0
      %p63 = por %p61, %p62
      %p64 = scmp.ne.s32.totalorder %s53, %s56
      %p65 = scmp.eq.s32.totalorder %s22, 1
      %p66 = por %p64, %p65
      %p67 = scmp.ne.s32.totalorder %s56, %s57
      %p68 = scmp.eq.s32.totalorder %s22, 0
      %p69 = por %p67, %p68
      %p70 = scmp.ne.s32.totalorder %s56, %s57
      %p71 = scmp.eq.s32.totalorder %s23, 1
      %p72 = por %p70, %p71
      %p74 = scmp.ne.s32.totalorder %s57, %s73
      %p75 = scmp.eq.s32.totalorder %s23, 0
      %p76 = por %p74, %p75
      %s77 = ssub.s32 %s17, %s24
      %p78 = scmp.eq.s32.totalorder %s77, 0
      %s80 = sadd.s32 %s79, 1
      %s81 = scalar_select %p78, %s79, %s80
      %p84 = pneg %p78
      %p85 = scmp.eq.s32.totalorder %s17, 1
      %p86 = por %p84, %p85
      %p87 = scmp.ne.s32.totalorder %s79, %s82
      %p88 = scmp.eq.s32.totalorder %s17, 0
      %p89 = por %p87, %p88
      %p90 = scmp.ne.s32.totalorder %s79, %s82
      %p91 = scmp.eq.s32.totalorder %s22, 1
      %p92 = por %p90, %p91
      %p93 = scmp.ne.s32.totalorder %s82, %s83
      %p94 = scmp.eq.s32.totalorder %s22, 0
      %p95 = por %p93, %p94
      %p96 = scmp.ne.s32.totalorder %s82, %s83
      %p97 = scmp.eq.s32.totalorder %s23, 1
      %p98 = por %p96, %p97
      %p100 = scmp.ne.s32.totalorder %s83, %s99
      %p101 = scmp.eq.s32.totalorder %s23, 0
      %p102 = por %p100, %p101
      %p103 = scmp.le.s32.totalorder 1, %s17
      %p104 = scmp.lt.s32.totalorder %s17, 3
      %p105 = pnand %p103, %p104
      %p106 = pneg %p105
      // Predicated region
      $region9: #{tpu_custom_call.1} parent=5 // pred_check
        _
      $region10: #{tpu_custom_call.1} parent=5 // pred_check_branch
        %108 = sbr.rel (%p105) target = $region12
      $region11: #{tpu_custom_call.1} parent=5 // pred_region
        %s109 = ssub.s32 %s17, 1
      $region12: #{tpu_custom_call.1} parent=5 // pred_fallthru
        _
      %p110 = scmp.lt.s32.totalorder %s17, 2
      // Predicated region
      $region13: #{tpu_custom_call.1} parent=5 // pred_check
        %p111 = pneg %p110
      $region14: #{tpu_custom_call.1} parent=5 // pred_check_branch
        %113 = sbr.rel (%p111) target = $region16
      $region15: #{tpu_custom_call.1} parent=5 // pred_region
        // Predicated region
        $region17: #{tpu_custom_call.1} parent=15 // pred_check
          %p114 = pneg %p37
        $region18: #{tpu_custom_call.1} parent=15 // pred_check_branch
          %116 = sbr.rel (%p114) target = $region20
        $region19: #{tpu_custom_call.1} parent=15 // pred_region
          %s117 = sand.u32 %s27, 1
          %s118 = scalar_lea.sflag [#allocation3], %s117
          %s119 = sand.u32 %s27, 1
          %s120 = smul.addr %s119, 8
          %s121 = scalar_lea.vmem [#allocation2], %s120
          %s123 = ssub.s32 128, 128
          %124 = vsyncadd %s118, %s123
          %s125 = smul.addr %s17, 128
          %s126 = scalar_lea.hbm %s0, %s125
          %s128 = sshll.u32 %s121, 4
          %s129 = int_to_ptr.vmem [resolvable:$true] %s128
          %131 = dma.hbm_to_vmem [thread:$0]  %s126, 128, %s129, %s118
        $region20: #{tpu_custom_call.1} parent=15 // pred_fallthru
          _
        // Predicated region
        $region21: #{tpu_custom_call.1} parent=15 // pred_check
          %p132 = pneg %p63
        $region22: #{tpu_custom_call.1} parent=15 // pred_check_branch
          %134 = sbr.rel (%p132) target = $region24
        $region23: #{tpu_custom_call.1} parent=15 // pred_region
          %s135 = sand.u32 %s53, 1
          %s136 = scalar_lea.sflag [#allocation6], %s135
          %s137 = sand.u32 %s53, 1
          %s138 = smul.addr %s137, 8
          %s139 = scalar_lea.vmem [#allocation5], %s138
          %s141 = ssub.s32 128, 128
          %142 = vsyncadd %s136, %s141
          %s143 = smul.addr %s17, 128
          %s144 = scalar_lea.hbm %s1, %s143
          %s146 = sshll.u32 %s139, 4
          %s147 = int_to_ptr.vmem [resolvable:$true] %s146
          %149 = dma.hbm_to_vmem [thread:$0]  %s144, 128, %s147, %s136
        $region24: #{tpu_custom_call.1} parent=15 // pred_fallthru
          _
      $region16: #{tpu_custom_call.1} parent=5 // pred_fallthru
        _
      %p150 = scmp.le.s32.totalorder 1, %s17
      %p151 = scmp.lt.s32.totalorder %s17, 3
      %p152 = pnand %p150, %p151
      %p153 = pneg %p152
      // Predicated region
      $region25: #{tpu_custom_call.1} parent=5 // pred_check
        _
      $region26: #{tpu_custom_call.1} parent=5 // pred_check_branch
        %155 = sbr.rel (%p152) target = $region28
      $region27: #{tpu_custom_call.1} parent=5 // pred_region
        %s156 = ssub.s32 %s17, 1
        %s157 = sand.u32 %s30, 1
        %s158 = scalar_lea.sflag [#allocation3], %s157
        %s159 = sand.u32 %s30, 1
        %s160 = smul.addr %s159, 8
        %s161 = scalar_lea.vmem [#allocation2], %s160
        // Predicated region
        $region29: #{tpu_custom_call.1} parent=27 // pred_check
          %p162 = pneg %p43
        $region30: #{tpu_custom_call.1} parent=27 // pred_check_branch
          %164 = sbr.rel (%p162) target = $region32
        $region31: #{tpu_custom_call.1} parent=27 // pred_region
          %165 = dma.done %s158, 128
        $region32: #{tpu_custom_call.1} parent=27 // pred_fallthru
          _
        %s166 = sand.u32 %s56, 1
        %s167 = scalar_lea.sflag [#allocation6], %s166
        %s168 = sand.u32 %s56, 1
        %s169 = smul.addr %s168, 8
        %s170 = scalar_lea.vmem [#allocation5], %s169
        // Predicated region
        $region33: #{tpu_custom_call.1} parent=27 // pred_check
          %p171 = pneg %p69
        $region34: #{tpu_custom_call.1} parent=27 // pred_check_branch
          %173 = sbr.rel (%p171) target = $region36
        $region35: #{tpu_custom_call.1} parent=27 // pred_region
          %174 = dma.done %s167, 128
        $region36: #{tpu_custom_call.1} parent=27 // pred_fallthru
          _
        %s175 = sand.u32 %s30, 1
        %s176 = scalar_lea.sflag [#allocation3], %s175
        %s177 = sand.u32 %s30, 1
        %s178 = smul.addr %s177, 8
        %s179 = scalar_lea.vmem [#allocation2], %s178
        %p180 = pneg %p43
        %p181 = pneg %p40
        %s182 = sand.u32 %s56, 1
        %s183 = scalar_lea.sflag [#allocation6], %s182
        %s184 = sand.u32 %s56, 1
        %s185 = smul.addr %s184, 8
        %s186 = scalar_lea.vmem [#allocation5], %s185
        %p187 = pneg %p69
        %p188 = pneg %p66
        %p189 = pneg %p95
        %p190 = pneg %p92
        %s191 = sand.u32 %s82, 1
        %s192 = scalar_lea.sflag [#allocation4], %s191
        %s193 = sand.u32 %s82, 1
        %s194 = smul.addr %s193, 8
        %s195 = scalar_lea.vmem [#allocation7], %s194
        %v196 = vld [vmem:[%s161] sm:$0xff]
        %v197 = vld [vmem:[%s170] sm:$0xff]
        %v198 = vsub.f32 %v196, %v197
        %v199 = vmul.f32 %v198, %v198
        %v200 = vadd.f32 %v199, 1e-06
        %v201 = vrsqrt.pop %v200
        %v202 = vmul.f32 %v200, %v201
        %vm203 = vcmp.eq.f32.partialorder %v200, inf
        %v204 = vsel %vm203, %v200, %v202
        %vm205 = vcmp.eq.f32.partialorder %v200, 0.0
        %v206 = vand.u32 %v200, 2147483648
        %v207 = vsel %vm205, %v206, %v204
        %v208 = vadd.f32 %v207, 0.0
        %v209 = vadd.f32 %v208, 0.0
        %210 = vst [vmem:[%s195] sm:$0xff] %v209
        %s211 = sand.u32 %s82, 1
        %s212 = scalar_lea.sflag [#allocation4], %s211
        %s213 = sand.u32 %s82, 1
        %s214 = smul.addr %s213, 8
        %s215 = scalar_lea.vmem [#allocation7], %s214
        // Predicated region
        $region37: #{tpu_custom_call.1} parent=27 // pred_check
          %p216 = pneg %p92
        $region38: #{tpu_custom_call.1} parent=27 // pred_check_branch
          %218 = sbr.rel (%p216) target = $region40
        $region39: #{tpu_custom_call.1} parent=27 // pred_region
          %s220 = ssub.s32 128, 128
          %221 = vsyncadd %s212, %s220
          %s222 = smul.addr %s22, 128
          %s223 = scalar_lea.hbm %s2, %s222
          %s225 = sshll.u32 %s215, 4
          %s226 = int_to_ptr.vmem [resolvable:$true] %s225
          %228 = dma.vmem_to_hbm [thread:$0]  %s226, 128, %s223, %s212
        $region40: #{tpu_custom_call.1} parent=27 // pred_fallthru
          _
      $region28: #{tpu_custom_call.1} parent=5 // pred_fallthru
        _
      %p229 = scmp.le.s32.totalorder 2, %s17
      // Predicated region
      $region41: #{tpu_custom_call.1} parent=5 // pred_check
        %p230 = pneg %p229
      $region42: #{tpu_custom_call.1} parent=5 // pred_check_branch
        %232 = sbr.rel (%p230) target = $region44
      $region43: #{tpu_custom_call.1} parent=5 // pred_region
        %s233 = ssub.s32 %s17, 2
        // Predicated region
        $region45: #{tpu_custom_call.1} parent=43 // pred_check
          %p234 = pneg %p98
        $region46: #{tpu_custom_call.1} parent=43 // pred_check_branch
          %236 = sbr.rel (%p234) target = $region48
        $region47: #{tpu_custom_call.1} parent=43 // pred_region
          %s237 = sand.u32 %s83, 1
          %s238 = scalar_lea.sflag [#allocation4], %s237
          %s239 = sand.u32 %s83, 1
          %s240 = smul.addr %s239, 8
          %s241 = scalar_lea.vmem [#allocation7], %s240
          %242 = dma.done %s238, 128
        $region48: #{tpu_custom_call.1} parent=43 // pred_fallthru
          _
      $region44: #{tpu_custom_call.1} parent=5 // pred_fallthru
        _
    $region6: #{tpu_custom_call.1} parent=1 // loop_footer
      %s21 = sadd.s32 1, %s17
    $region7: #{tpu_custom_call.1} parent=1 // loop_footer_branch
      %16 = sbr.rel target = $region3
    $region8: #{tpu_custom_call.1} parent=1 // loop_exit
      _
    %243 = vsyncpa [#allocation3], 1
    %s244 = scalar_lea.sflag [#allocation3], 1
    %245 = vsyncpa %s244, 1
    %246 = vsyncpa [#allocation6], 1
    %s247 = scalar_lea.sflag [#allocation6], 1
    %248 = vsyncpa %s247, 1
    %249 = vsyncpa [#allocation4], 1
    %s250 = scalar_lea.sflag [#allocation4], 1
    %251 = vsyncpa %s250, 1

</llo_original>
